<compile_context>
chip_gen: v5e
topology: v5e:2x2
jax: 0.10.0
libtpu: 0.0.40
codegen_flags: <defaults>
</compile_context>

<pallas_src>
import functools

import jax
import jax.numpy as jnp
from jax.experimental import pallas as pl
from jax.experimental.pallas import tpu as pltpu


def _self_attention_kernel(x_ref, wqkv_ref, out_ref, attn_ref, *,
                           scale, key_size):
    # x_ref: (B, S, H); wqkv_ref: (H, 2K + H)
    B, S, H = x_ref.shape
    K = key_size

    # Single fused projection matmul over all batches/positions at once.
    x2d = x_ref[...].reshape(B * S, H)                               # (B*S, H)
    qkv = jnp.dot(x2d, wqkv_ref[...],
                  preferred_element_type=jnp.float32)                # (B*S, 2K+H)

    q = qkv[:, :K].reshape(B, S, K)
    k = qkv[:, K:2 * K].reshape(B, S, K)
    v = qkv[:, 2 * K:].reshape(B, S, H)

    # Transposed scores: scores_t[b, j, i] = (q_i . k_j) * scale.
    # torch Softmax(dim=1) on scores[b, i, j] == softmax over the LAST axis of
    # scores_t, so the XLU max/sum reductions run along the lane axis.
    scores_t = jnp.einsum("bjk,bik->bji", k, q,
                          preferred_element_type=jnp.float32) * scale

    m = jnp.max(scores_t, axis=-1, keepdims=True)
    e = jnp.exp(scores_t - m)
    attn_t = e / jnp.sum(e, axis=-1, keepdims=True)    # exact reciprocal

    # out[b,i,d] = sum_j attn[b,i,j] * v[b,j,d] = sum_j attn_t[b,j,i] * v[b,j,d]
    out_ref[...] = jnp.einsum("bji,bjd->bid", attn_t, v,
                              preferred_element_type=jnp.float32
                              ).astype(out_ref.dtype)

    # attn output (lane-sparse last dim = S): transpose only at writeback.
    attn_ref[...] = jnp.transpose(attn_t, (0, 2, 1)).astype(attn_ref.dtype)


def make_self_attention(w_q, w_k, w_v, key_size):
    """Fuse projection weights once and return a jitted forward closure.

    w_q/w_k: [H, K]; w_v: [H, H]  (already transposed to [in, out]).
    Returned callable: x [B, S, H] -> (out [B, S, H], attn [B, S, S]).
    """
    H, K = w_q.shape
    assert K == key_size
    scale = 1.0 / float(key_size) ** 0.5

    # Fused [H, 2K + H] projection matrix — built ONCE at setup time, not per
    # forward call.
    w_qkv = jnp.concatenate([w_q, w_k, w_v], axis=1)

    kernel = functools.partial(_self_attention_kernel, scale=scale, key_size=K)

    @jax.jit
    def forward(x):
        B, S, _ = x.shape
        flops = 2 * B * S * H * (2 * K + H) + 2 * B * S * S * (K + H)
        bytes_accessed = 4 * (B * S * H            # x
                              + H * (2 * K + H)    # fused weights
                              + B * S * H          # out
                              + B * S * S)         # attn
        return pl.pallas_call(
            kernel,
            out_shape=(
                jax.ShapeDtypeStruct((B, S, H), jnp.float32),
                jax.ShapeDtypeStruct((B, S, S), jnp.float32),
            ),
            # No grid: whole problem in one step, whole arrays resident in VMEM.
            in_specs=[
                pl.BlockSpec(memory_space=pltpu.MemorySpace.VMEM),
                pl.BlockSpec(memory_space=pltpu.MemorySpace.VMEM),
            ],
            out_specs=(
                pl.BlockSpec(memory_space=pltpu.MemorySpace.VMEM),
                pl.BlockSpec(memory_space=pltpu.MemorySpace.VMEM),
            ),
            cost_estimate=pl.CostEstimate(
                flops=flops,
                transcendentals=B * S * S,
                bytes_accessed=bytes_accessed,
            ),
        )(x, w_qkv)

    return forward


def _reference(x, w_q, w_k, w_v, key_size):
    """Pure-JAX reference mirroring the PyTorch forward (eval mode)."""
    q = jnp.einsum("bsh,hk->bsk", x, w_q, precision="highest")
    k = jnp.einsum("bsh,hk->bsk", x, w_k, precision="highest")
    v = jnp.einsum("bsh,hd->bsd", x, w_v, precision="highest")
    scores = jnp.einsum("bik,bjk->bij", q, k,
                        precision="highest") / (float(key_size) ** 0.5)
    attn = jax.nn.softmax(scores, axis=1)          # torch Softmax(dim=1)
    out = jnp.einsum("bij,bjd->bid", attn, v, precision="highest")
    return out, attn


if __name__ == "__main__":
    B, S, H, K = 2, 8, 32, 16   # batch, max_seq_len, hidden_size, key_size

    key = jax.random.PRNGKey(0)
    kx, kq, kk, kv = jax.random.split(key, 4)

    x = jax.random.normal(kx, (B, S, H), dtype=jnp.float32)
    # Deterministic "nn.Linear" weights (stored as [in, out], i.e. W^T).
    w_q = jax.random.normal(kq, (H, K), dtype=jnp.float32) * 0.1
    w_k = jax.random.normal(kk, (H, K), dtype=jnp.float32) * 0.1
    w_v = jax.random.normal(kv, (H, H), dtype=jnp.float32) * 0.1

    self_attention = make_self_attention(w_q, w_k, w_v, key_size=K)

    out, attn = self_attention(x)
    jax.block_until_ready((out, attn))

    out_ref, attn_ref = _reference(x, w_q, w_k, w_v, key_size=K)
    # Exact-reciprocal softmax: tolerance tightened vs. the previous 5e-3
    # (remaining delta is f32-matmul accumulation-order / pass differences).
    assert jnp.allclose(out, out_ref, atol=1e-3, rtol=1e-3), "output mismatch"
    assert jnp.allclose(attn, attn_ref, atol=1e-3, rtol=1e-3), "attn mismatch"
    assert out.shape == (B, S, H) and attn.shape == (B, S, S)

    print("KERNEL_OK")
</pallas_src>

<mosaic_0001>
module attributes {stable_mosaic.version = 11 : i64} {
  func.func @_self_attention_kernel(%arg0: memref<2x8x32xf32, #tpu.memory_space<vmem>>, %arg1: memref<32x64xf32, #tpu.memory_space<vmem>>, %arg2: memref<2x8x32xf32, #tpu.memory_space<vmem>>, %arg3: memref<2x8x8xf32, #tpu.memory_space<vmem>>) attributes {dimension_semantics = [], scalar_prefetch = 0 : i64, scratch_operands = 0 : i64, tpu.core_type = #tpu.core_type<tc>} {
    %c0 = arith.constant 0 : index
    %c0_0 = arith.constant 0 : index
    %c0_1 = arith.constant 0 : index
    %0 = vector.load %arg0[%c0, %c0_0, %c0_1] : memref<2x8x32xf32, #tpu.memory_space<vmem>>, vector<2x8x32xf32>
    %1 = vector.shape_cast %0 : vector<2x8x32xf32> to vector<16x32xf32>
    %c0_2 = arith.constant 0 : index
    %c0_3 = arith.constant 0 : index
    %2 = vector.load %arg1[%c0_2, %c0_3] : memref<32x64xf32, #tpu.memory_space<vmem>>, vector<32x64xf32>
    %cst = arith.constant dense<0.000000e+00> : vector<16x64xf32>
    %3 = tpu.matmul %1, %2, %cst {dimension_numbers = #tpu.dot_dimension_numbers<[1], [0], [0], [1], [0, 0, 1, 1], [], []>} : vector<16x32xf32>, vector<32x64xf32>, vector<16x64xf32> -> vector<16x64xf32>
    %4 = vector.extract_strided_slice %3 {offsets = [0, 0], sizes = [16, 16], strides = [1, 1]} : vector<16x64xf32> to vector<16x16xf32>
    %5 = vector.shape_cast %4 : vector<16x16xf32> to vector<2x8x16xf32>
    %6 = vector.extract_strided_slice %3 {offsets = [0, 16], sizes = [16, 16], strides = [1, 1]} : vector<16x64xf32> to vector<16x16xf32>
    %7 = vector.shape_cast %6 : vector<16x16xf32> to vector<2x8x16xf32>
    %8 = vector.extract_strided_slice %3 {offsets = [0, 32], sizes = [16, 32], strides = [1, 1]} : vector<16x64xf32> to vector<16x32xf32>
    %9 = vector.shape_cast %8 : vector<16x32xf32> to vector<2x8x32xf32>
    "tpu.trace_start"() <{level = 10 : i32, message = "bjk,bik->bji"}> : () -> ()
    %cst_4 = arith.constant dense<0.000000e+00> : vector<2x8x8xf32>
    %10 = tpu.matmul %7, %5, %cst_4 {dimension_numbers = #tpu.dot_dimension_numbers<[2], [2], [1], [1], [0, 0, 0, 1, 1, 1], [0], [0]>} : vector<2x8x16xf32>, vector<2x8x16xf32>, vector<2x8x8xf32> -> vector<2x8x8xf32>
    "tpu.trace_stop"() : () -> ()
    %cst_5 = arith.constant 2.500000e-01 : f32
    %11 = vector.broadcast %cst_5 : f32 to vector<2x8x8xf32>
    %12 = arith.mulf %10, %11 : vector<2x8x8xf32>
    %cst_6 = arith.constant dense<0xFF800000> : vector<2x8xf32>
    %13 = vector.multi_reduction <maximumf>, %12, %cst_6 [2] : vector<2x8x8xf32> to vector<2x8xf32>
    %14 = vector.shape_cast %13 : vector<2x8xf32> to vector<2x8x1xf32>
    %15 = vector.broadcast %14 : vector<2x8x1xf32> to vector<2x8x8xf32>
    %16 = arith.subf %12, %15 : vector<2x8x8xf32>
    %17 = math.exp %16 : vector<2x8x8xf32>
    %cst_7 = arith.constant dense<0.000000e+00> : vector<2x8xf32>
    %18 = vector.multi_reduction <add>, %17, %cst_7 [2] : vector<2x8x8xf32> to vector<2x8xf32>
    %19 = vector.shape_cast %18 : vector<2x8xf32> to vector<2x8x1xf32>
    %20 = vector.broadcast %19 : vector<2x8x1xf32> to vector<2x8x8xf32>
    %21 = arith.divf %17, %20 : vector<2x8x8xf32>
    "tpu.trace_start"() <{level = 10 : i32, message = "bji,bjd->bid"}> : () -> ()
    %cst_8 = arith.constant dense<0.000000e+00> : vector<2x8x32xf32>
    %22 = tpu.matmul %21, %9, %cst_8 {dimension_numbers = #tpu.dot_dimension_numbers<[1], [1], [2], [2], [0, 0, 0, 2, 1, 2], [0], [0]>} : vector<2x8x8xf32>, vector<2x8x32xf32>, vector<2x8x32xf32> -> vector<2x8x32xf32>
    "tpu.trace_stop"() : () -> ()
    %c0_9 = arith.constant 0 : index
    %c0_10 = arith.constant 0 : index
    %c0_11 = arith.constant 0 : index
    %23 = vector.load %arg2[%c0_9, %c0_10, %c0_11] : memref<2x8x32xf32, #tpu.memory_space<vmem>>, vector<2x8x32xf32>
    tpu.vector_store %arg2[%c0_9, %c0_10, %c0_11], %22 {strides = array<i32>} : memref<2x8x32xf32, #tpu.memory_space<vmem>>, vector<2x8x32xf32>,
    %24 = tpu.transpose %21, [0, 2, 1] : vector<2x8x8xf32> -> vector<2x8x8xf32>
    %c0_12 = arith.constant 0 : index
    %c0_13 = arith.constant 0 : index
    %c0_14 = arith.constant 0 : index
    %25 = vector.load %arg3[%c0_12, %c0_13, %c0_14] : memref<2x8x8xf32, #tpu.memory_space<vmem>>, vector<2x8x8xf32>
    tpu.vector_store %arg3[%c0_12, %c0_13, %c0_14], %24 {strides = array<i32>} : memref<2x8x8xf32, #tpu.memory_space<vmem>>, vector<2x8x8xf32>,
    return
  }
}

</mosaic_0001>

<llo_original>
// kernel: forward.1
$region0: #{forward.1}
  #allocation0 [shape = 'u32[]', space=smem, size = 0x4, offset = 0x4, fixed_abs, tag = 'smem constant byte address 0x4 - core index']
  #allocation1 [shape = 'u32[72,128]{1,0:T(1,128)}', space=vmem, size = 0x9000, scoped, tag = 'internal scratch']
  %s0 = inlined_call_operand.hbm [shape: f32[2,8,32], index: 0, kind: input, shape index: {}]
  %s1 = inlined_call_operand.hbm [shape: f32[32,64], index: 1, kind: input, shape index: {}]
  %s2 = inlined_call_operand.hbm [shape: f32[2,8,32], index: 2, kind: output, shape index: {0}]
  %s3 = inlined_call_operand.hbm [shape: f32[2,8,8], index: 3, kind: output, shape index: {1}]
  %4 = xla_tuple %s2, %s3
  %s5 = sld [smem:[#allocation0]]
  $region34: #{forward.1} parent=0
    _
  %s7 = ssub.s32 1, %s5
  %s8 = scalar_select 0, %s7, %s5
  $region1: #{forward.1} parent=0
    #allocation2 [shape = 'u8[8192]{0}', space=vmem, size = 0x2000, scoped, tag = 'input window, operand 0, single buffered']
    #allocation3 [shape = 's32[1]{0}', space=sflag, size = 0x4, scoped, tag = 'scoped memory for forward.1']
    #allocation4 [shape = 's32[1]{0}', space=sflag, size = 0x4, scoped, tag = 'scoped memory for forward.1']
    #allocation5 [shape = 'u8[16384]{0}', space=vmem, size = 0x4000, scoped, tag = 'input window, operand 1, single buffered']
    #allocation6 [shape = 's32[1]{0}', space=sflag, size = 0x4, scoped, tag = 'scoped memory for forward.1']
    #allocation7 [shape = 'u8[8192]{0}', space=vmem, size = 0x2000, scoped, tag = 'output window, operand 0, single buffered']
    #allocation8 [shape = 'u8[8192]{0}', space=vmem, size = 0x2000, scoped, tag = 'output window, operand 1, single buffered']
    #allocation9 [shape = 's32[1]{0}', space=sflag, size = 0x4, scoped, tag = 'scoped memory for forward.1']
    %9 = vsyncpa [#allocation3], 0
    %10 = vsyncpa [#allocation6], 0
    %11 = vsyncpa [#allocation4], 0
    %12 = vsyncpa [#allocation9], 0
    // Predicated region
    $region2: #{forward.1} parent=1 // pred_check
      _
    $region3: #{forward.1} parent=1 // pred_check_branch
      %14 = sbr.rel (0) target = $region5
    $region4: #{forward.1} parent=1 // pred_region
      %16 = vsyncadd [#allocation3], 0
      %s17 = sshll.u32 %s0, 4
      %s18 = int_to_ptr.hbm [resolvable:$true] %s17
      %s19 = sshll.u32 [#allocation2], 4
      %s20 = int_to_ptr.vmem [resolvable:$true] %s19
      %25 = dma.hbm_to_vmem [thread:$0]  %s18, 256, %s20, [#allocation3], 128, 128, 8
    $region5: #{forward.1} parent=1 // pred_fallthru
      _
    // Predicated region
    $region6: #{forward.1} parent=1 // pred_check
      _
    $region7: #{forward.1} parent=1 // pred_check_branch
      %27 = sbr.rel (0) target = $region9
    $region8: #{forward.1} parent=1 // pred_region
      %29 = vsyncadd [#allocation6], 0
      %s30 = sshll.u32 %s1, 4
      %s31 = int_to_ptr.hbm [resolvable:$true] %s30
      %s32 = sshll.u32 [#allocation5], 4
      %s33 = int_to_ptr.vmem [resolvable:$true] %s32
      %38 = dma.hbm_to_vmem [thread:$0]  %s31, 512, %s33, [#allocation6], 128, 128, 8
    $region9: #{forward.1} parent=1 // pred_fallthru
      _
    // Predicated region
    $region10: #{forward.1} parent=1 // pred_check
      _
    $region11: #{forward.1} parent=1 // pred_check_branch
      %40 = sbr.rel (0) target = $region13
    $region12: #{forward.1} parent=1 // pred_region
      %42 = dma.done [#allocation3], 256
    $region13: #{forward.1} parent=1 // pred_fallthru
      _
    // Predicated region
    $region14: #{forward.1} parent=1 // pred_check
      _
    $region15: #{forward.1} parent=1 // pred_check_branch
      %44 = sbr.rel (0) target = $region17
    $region16: #{forward.1} parent=1 // pred_region
      %46 = dma.done [#allocation6], 512
    $region17: #{forward.1} parent=1 // pred_fallthru
      _
    %v47 = vld [vmem:[#allocation2] sm:$0xff]
    %v48 = vld [vmem:[#allocation2 + $0x8] sm:$0xff]
    %v49 = vld [vmem:[#allocation5] sm:$0xff]
    %v50 = vld [vmem:[#allocation5 + $0x8] sm:$0xff]
    %v51 = vld [vmem:[#allocation5 + $0x10] sm:$0xff]
    %v52 = vld [vmem:[#allocation5 + $0x18] sm:$0xff]
    %vm53 = vcmask 261120
    %v55 = vsel %vm53, %v47, 0
    %v58 = vsel %vm53, %v48, 0
    %60 = vmatpush.msra.mxu0 0.0
    %61 = vmatpush.msra.mxu0 0.0
    %62 = vmatpush.msra.mxu0 0.0
    %63 = vmatpush.msra.mxu0 0.0
    %64 = vmatpush.msra.mxu0 0.0
    %65 = vmatpush.msra.mxu0 0.0
    %66 = vmatpush.msra.mxu0 0.0
    %67 = vmatpush.msra.mxu0 0.0
    %68 = vmatpush.msra.mxu0 0.0
    %69 = vmatpush.msra.mxu0 0.0
    %70 = vmatpush.msra.mxu0 0.0
    %71 = vmatpush.msra.mxu0 0.0
    %72 = vmatpush.msra.mxu0 %v52
    %73 = vmatpush.msra.mxu0 %v51
    %74 = vmatpush.msra.mxu0 %v50
    %75 = vmatpush.msra.mxu0 %v49
    %76 = vmatmul.f32.gmra.mxu0 %v55
    %v77 = vpop.f32.mrf.mxu0
    %v78 = vadd.f32 0.0, %v77
    %79 = vmatmul.f32.gmra.mxu0 %v58
    %v80 = vpop.f32.mrf.mxu0
    %v81 = vadd.f32 0.0, %v80
    %82 = vdwg.mxu0
    %84 = vrot.lane.b32.xlu0 %v78, 112
    %v85 = vpop.permute.xlu0 %84
    %vm86 = vcmask 130048
    %v87 = vsel %vm86, %v85, 0
    %v89 = vsel %vm86, %v78, 0
    %91 = vmatpush.xpose.msra.mxu0 0.0
    %92 = vmatpush.xpose.msra.mxu0 0.0
    %93 = vmatpush.xpose.msra.mxu0 0.0
    %94 = vmatpush.xpose.msra.mxu0 0.0
    %95 = vmatpush.xpose.msra.mxu0 0.0
    %96 = vmatpush.xpose.msra.mxu0 0.0
    %97 = vmatpush.xpose.msra.mxu0 0.0
    %98 = vmatpush.xpose.msra.mxu0 0.0
    %99 = vmatpush.xpose.msra.mxu0 0.0
    %100 = vmatpush.xpose.msra.mxu0 0.0
    %101 = vmatpush.xpose.msra.mxu0 0.0
    %102 = vmatpush.xpose.msra.mxu0 0.0
    %103 = vmatpush.xpose.msra.mxu0 0.0
    %104 = vmatpush.xpose.msra.mxu0 0.0
    %105 = vmatpush.xpose.msra.mxu0 0.0
    %106 = vmatpush.xpose.msra.mxu0 %v89
    %107 = vmatmul.f32.gmra.mxu0 %v87
    %v108 = vpop.f32.mrf.mxu0
    %v109 = vadd.f32 0.0, %v108
    %110 = vdwg.mxu0
    %112 = vrot.lane.b32.xlu0 %v81, 112
    %v113 = vpop.permute.xlu0 %112
    %v114 = vsel %vm86, %v113, 0
    %v116 = vsel %vm86, %v81, 0
    %118 = vmatpush.xpose.msra.mxu0 0.0
    %119 = vmatpush.xpose.msra.mxu0 0.0
    %120 = vmatpush.xpose.msra.mxu0 0.0
    %121 = vmatpush.xpose.msra.mxu0 0.0
    %122 = vmatpush.xpose.msra.mxu0 0.0
    %123 = vmatpush.xpose.msra.mxu0 0.0
    %124 = vmatpush.xpose.msra.mxu0 0.0
    %125 = vmatpush.xpose.msra.mxu0 0.0
    %126 = vmatpush.xpose.msra.mxu0 0.0
    %127 = vmatpush.xpose.msra.mxu0 0.0
    %128 = vmatpush.xpose.msra.mxu0 0.0
    %129 = vmatpush.xpose.msra.mxu0 0.0
    %130 = vmatpush.xpose.msra.mxu0 0.0
    %131 = vmatpush.xpose.msra.mxu0 0.0
    %132 = vmatpush.xpose.msra.mxu0 0.0
    %133 = vmatpush.xpose.msra.mxu0 %v116
    %134 = vmatmul.f32.gmra.mxu0 %v114
    %v135 = vpop.f32.mrf.mxu0
    %v136 = vadd.f32 0.0, %v135
    %137 = vdwg.mxu0
    %v138 = vmul.f32 %v109, 0.25
    %v139 = vmul.f32 %v136, 0.25
    %vm140 = vcmask 64512
    %v141 = vsel %vm140, %v138, -inf
    %142 = vmax.xlane.f32.xlu0 %v141
    %v143 = vpop.xlane.xlu0 %142
    %v144 = vsel %vm140, %v139, -inf
    %145 = vmax.xlane.f32.xlu0 %v144
    %v146 = vpop.xlane.xlu0 %145
    %v147 = vsub.f32 %v138, %v143
    %v148 = vsub.f32 %v139, %v146
    %v149 = vmul.f32 %v147, 1.442695
    %v150 = vpow.pop %v149
    %v151 = vmul.f32 %v148, 1.442695
    %v152 = vpow.pop %v151
    %v153 = vsel %vm140, %v150, 0.0
    %154 = vadd.xlane.f32.xlu0 %v153
    %v155 = vpop.xlane.xlu0 %154
    %v156 = vsel %vm140, %v152, 0.0
    %157 = vadd.xlane.f32.xlu0 %v156
    %v158 = vpop.xlane.xlu0 %157
    %v159 = vrcp.pop %v155
    %v160 = vmul.f32 %v155, %v159
    %v161 = vsub.f32 1.0, %v160
    %v162 = vmul.f32 %v159, %v161
    %v163 = vadd.f32 %v159, %v162
    %vm164 = vweird.f32 %v155
    %vm165 = vweird.f32 %v159
    %vm166 = vmor %vm164, %vm165
    %v167 = vsel %vm166, %v159, %v163
    %v168 = vand.u32 2147483647, %v155
    %vm169 = vcmp.eq.f32.partialorder %v168, 8.507059e+37
    %v170 = vand.u32 %v155, 2147483648
    %v171 = vor.u32 1.1754944e-38, %v170
    %v172 = vsel %vm169, %v171, %v167
    %v173 = vmul.f32 %v150, %v172
    %v174 = vrcp.pop %v158
    %v175 = vmul.f32 %v158, %v174
    %v176 = vsub.f32 1.0, %v175
    %v177 = vmul.f32 %v174, %v176
    %v178 = vadd.f32 %v174, %v177
    %vm179 = vweird.f32 %v158
    %vm180 = vweird.f32 %v174
    %vm181 = vmor %vm179, %vm180
    %v182 = vsel %vm181, %v174, %v178
    %v183 = vand.u32 2147483647, %v158
    %vm184 = vcmp.eq.f32.partialorder %v183, 8.507059e+37
    %v185 = vand.u32 %v158, 2147483648
    %v186 = vor.u32 1.1754944e-38, %v185
    %v187 = vsel %vm184, %v186, %v182
    %v188 = vmul.f32 %v152, %v187
    %189 = vxpose.xlu0.b32.start [1/16] %v173, 128
    %190 = vxpose.xlu0.b32.cont [2/16] 0.0, 128
    %191 = vxpose.xlu0.b32.cont [3/16] 0.0, 128
    %192 = vxpose.xlu0.b32.cont [4/16] 0.0, 128
    %193 = vxpose.xlu0.b32.cont [5/16] 0.0, 128
    %194 = vxpose.xlu0.b32.cont [6/16] 0.0, 128
    %195 = vxpose.xlu0.b32.cont [7/16] 0.0, 128
    %196 = vxpose.xlu0.b32.cont [8/16] 0.0, 128
    %197 = vxpose.xlu0.b32.cont [9/16] 0.0, 128
    %198 = vxpose.xlu0.b32.cont [10/16] 0.0, 128
    %199 = vxpose.xlu0.b32.cont [11/16] 0.0, 128
    %200 = vxpose.xlu0.b32.cont [12/16] 0.0, 128
    %201 = vxpose.xlu0.b32.cont [13/16] 0.0, 128
    %202 = vxpose.xlu0.b32.cont [14/16] 0.0, 128
    %203 = vxpose.xlu0.b32.cont [15/16] 0.0, 128
    %204 = vxpose.xlu0.b32.end [16/16] 0.0, 128
    %v205 = vpop.trf.xlu0
    %v206 = vpop.trf.xlu0
    %v207 = vpop.trf.xlu0
    %v208 = vpop.trf.xlu0
    %v209 = vpop.trf.xlu0
    %v210 = vpop.trf.xlu0
    %v211 = vpop.trf.xlu0
    %v212 = vpop.trf.xlu0
    %v213 = vpop.trf.xlu0
    %v214 = vpop.trf.xlu0
    %v215 = vpop.trf.xlu0
    %v216 = vpop.trf.xlu0
    %v217 = vpop.trf.xlu0
    %v218 = vpop.trf.xlu0
    %v219 = vpop.trf.xlu0
    %v220 = vpop.trf.xlu0
    %221 = vrot.lane.b32.xlu0 %v78, 96
    %v222 = vpop.permute.xlu0 %221
    %v225 = vsel %vm140, %v205, 0
    %227 = vmatpush.msra.mxu0 0.0
    %228 = vmatpush.msra.mxu0 0.0
    %229 = vmatpush.msra.mxu0 0.0
    %230 = vmatpush.msra.mxu0 0.0
    %231 = vmatpush.msra.mxu0 0.0
    %232 = vmatpush.msra.mxu0 0.0
    %233 = vmatpush.msra.mxu0 0.0
    %234 = vmatpush.msra.mxu0 0.0
    %235 = vmatpush.msra.mxu0 0.0
    %236 = vmatpush.msra.mxu0 0.0
    %237 = vmatpush.msra.mxu0 0.0
    %238 = vmatpush.msra.mxu0 0.0
    %239 = vmatpush.msra.mxu0 0.0
    %240 = vmatpush.msra.mxu0 0.0
    %241 = vmatpush.msra.mxu0 0.0
    %242 = vmatpush.msra.mxu0 %v222
    %243 = vmatmul.f32.gmra.mxu0 %v225
    %v244 = vpop.f32.mrf.mxu0
    %v245 = vadd.f32 0.0, %v244
    %246 = vdwg.mxu0
    %247 = vxpose.xlu0.b32.start [1/16] %v188, 128
    %248 = vxpose.xlu0.b32.cont [2/16] 0.0, 128
    %249 = vxpose.xlu0.b32.cont [3/16] 0.0, 128
    %250 = vxpose.xlu0.b32.cont [4/16] 0.0, 128
    %251 = vxpose.xlu0.b32.cont [5/16] 0.0, 128
    %252 = vxpose.xlu0.b32.cont [6/16] 0.0, 128
    %253 = vxpose.xlu0.b32.cont [7/16] 0.0, 128
    %254 = vxpose.xlu0.b32.cont [8/16] 0.0, 128
    %255 = vxpose.xlu0.b32.cont [9/16] 0.0, 128
    %256 = vxpose.xlu0.b32.cont [10/16] 0.0, 128
    %257 = vxpose.xlu0.b32.cont [11/16] 0.0, 128
    %258 = vxpose.xlu0.b32.cont [12/16] 0.0, 128
    %259 = vxpose.xlu0.b32.cont [13/16] 0.0, 128
    %260 = vxpose.xlu0.b32.cont [14/16] 0.0, 128
    %261 = vxpose.xlu0.b32.cont [15/16] 0.0, 128
    %262 = vxpose.xlu0.b32.end [16/16] 0.0, 128
    %v263 = vpop.trf.xlu0
    %v264 = vpop.trf.xlu0
    %v265 = vpop.trf.xlu0
    %v266 = vpop.trf.xlu0
    %v267 = vpop.trf.xlu0
    %v268 = vpop.trf.xlu0
    %v269 = vpop.trf.xlu0
    %v270 = vpop.trf.xlu0
    %v271 = vpop.trf.xlu0
    %v272 = vpop.trf.xlu0
    %v273 = vpop.trf.xlu0
    %v274 = vpop.trf.xlu0
    %v275 = vpop.trf.xlu0
    %v276 = vpop.trf.xlu0
    %v277 = vpop.trf.xlu0
    %v278 = vpop.trf.xlu0
    %279 = vrot.lane.b32.xlu0 %v81, 96
    %v280 = vpop.permute.xlu0 %279
    %v283 = vsel %vm140, %v263, 0
    %285 = vmatpush.msra.mxu0 0.0
    %286 = vmatpush.msra.mxu0 0.0
    %287 = vmatpush.msra.mxu0 0.0
    %288 = vmatpush.msra.mxu0 0.0
    %289 = vmatpush.msra.mxu0 0.0
    %290 = vmatpush.msra.mxu0 0.0
    %291 = vmatpush.msra.mxu0 0.0
    %292 = vmatpush.msra.mxu0 0.0
    %293 = vmatpush.msra.mxu0 0.0
    %294 = vmatpush.msra.mxu0 0.0
    %295 = vmatpush.msra.mxu0 0.0
    %296 = vmatpush.msra.mxu0 0.0
    %297 = vmatpush.msra.mxu0 0.0
    %298 = vmatpush.msra.mxu0 0.0
    %299 = vmatpush.msra.mxu0 0.0
    %300 = vmatpush.msra.mxu0 %v280
    %301 = vmatmul.f32.gmra.mxu0 %v283
    %v302 = vpop.f32.mrf.mxu0
    %v303 = vadd.f32 0.0, %v302
    %304 = vdwg.mxu0
    %305 = vst.msk [vmem:[#allocation7] sm:$0xff] %vm53, %v245
    %306 = vst.msk [vmem:[#allocation7 + $0x8] sm:$0xff] %vm53, %v303
    %307 = vst.msk [vmem:[#allocation8] sm:$0xff] %vm140, %v205
    %308 = vst.msk [vmem:[#allocation8 + $0x8] sm:$0xff] %vm140, %v263
    // Predicated region
    $region18: #{forward.1} parent=1 // pred_check
      _
    $region19: #{forward.1} parent=1 // pred_check_branch
      %310 = sbr.rel (0) target = $region21
    $region20: #{forward.1} parent=1 // pred_region
      %312 = vsyncadd [#allocation4], 0
      %s313 = sshll.u32 [#allocation7], 4
      %s314 = int_to_ptr.vmem [resolvable:$true] %s313
      %s315 = sshll.u32 %s2, 4
      %s316 = int_to_ptr.hbm [resolvable:$true] %s315
      %321 = dma.vmem_to_hbm [thread:$0]  %s314, 256, %s316, [#allocation4], 128, 128, 8
    $region21: #{forward.1} parent=1 // pred_fallthru
      _
    // Predicated region
    $region22: #{forward.1} parent=1 // pred_check
      _
    $region23: #{forward.1} parent=1 // pred_check_branch
      %323 = sbr.rel (0) target = $region25
    $region24: #{forward.1} parent=1 // pred_region
      %325 = vsyncadd [#allocation9], 0
      %s326 = sshll.u32 [#allocation8], 4
      %s327 = int_to_ptr.vmem [resolvable:$true] %s326
      %s328 = sshll.u32 %s3, 4
      %s329 = int_to_ptr.hbm [resolvable:$true] %s328
      %334 = dma.vmem_to_hbm [thread:$0]  %s327, 256, %s329, [#allocation9], 128, 128, 8
    $region25: #{forward.1} parent=1 // pred_fallthru
      _
    // Predicated region
    $region26: #{forward.1} parent=1 // pred_check
      _
    $region27: #{forward.1} parent=1 // pred_check_branch
      %336 = sbr.rel (0) target = $region29
    $region28: #{forward.1} parent=1 // pred_region
      %338 = dma.done [#allocation4], 256
    $region29: #{forward.1} parent=1 // pred_fallthru
      _
    // Predicated region
    $region30: #{forward.1} parent=1 // pred_check
      _
    $region31: #{forward.1} parent=1 // pred_check_branch
      %340 = sbr.rel (0) target = $region33
    $region32: #{forward.1} parent=1 // pred_region
      %342 = dma.done [#allocation9], 256
    $region33: #{forward.1} parent=1 // pred_fallthru
      _
    %343 = vsyncpa [#allocation3], 1
    %344 = vsyncpa [#allocation6], 1
    %345 = vsyncpa [#allocation4], 1
    %346 = vsyncpa [#allocation9], 1

</llo_original>
